<compile_context>
chip_gen: v5e
topology: v5e:2x2
jax: 0.10.0
libtpu: 0.0.40
codegen_flags: <defaults>
</compile_context>

<pallas_src>
import functools

import jax
import jax.numpy as jnp
from jax.experimental import pallas as pl
from jax.experimental.pallas import tpu as pltpu


# ----------------------------------------------------------------------------
# Kernel
# ----------------------------------------------------------------------------
def _make_actor_kernel(pre, post, hidden, act_pad, n_extra, compute_dtype):
    """Fused forward kernel.

    Packed per-feature row table `vecs` (rows zero-padded to `maxw` lanes):
      0 left-half lane mask (1.0 for the first `pre` lanes, else 0.0)
      1 [bp1 | bq1]   first-layer biases of both preprocessors
      2 [g1  | g2 ]   LayerNorm gammas
      3 [c1  | c2 ]   LayerNorm betas
      4 [bp2 | bq2]   second-layer biases of both preprocessors
      5 ba1           actor trunk layer-1 bias
      6..5+n_extra    trunk hidden-layer biases
      6+n_extra       output bias, zero-padded to `act_pad` lanes
    """
    two_pre = 2 * pre
    two_post = 2 * post
    cast_needed = compute_dtype != jnp.float32

    def kernel(obsz_ref, vecs_ref, w_in_ref, w2_ref, wa1_ref, *rest):
        *hid_refs, wout_ref, out_ref = rest

        def vec(row, width):                      # static ref slice -> [1, width]
            return vecs_ref[row:row + 1, :width]

        def mm(x, w_ref):                         # MXU matmul, f32 accumulation
            if cast_needed:                       # cast once per activation (each
                x = x.astype(compute_dtype)       # activation feeds exactly one mm)
            return jnp.dot(x, w_ref[...], preferred_element_type=jnp.float32)

        # One fused first matmul for BOTH preprocessors over cat([obs, z]):
        #   w_in = [[wp1, wq1_obs], [0, wq1_z]]   -> t = [h1_raw | h2_raw]
        t = mm(obsz_ref[...], w_in_ref) + vec(1, two_pre)        # [bb, 2*pre]

        # Per-half LayerNorm done full-width via a lane mask (no slice / concat).
        leftf = vec(0, two_pre)                                  # [1, 2*pre] in {0,1}
        rightf = 1.0 - leftf
        inv_pre = 1.0 / float(pre)
        m1 = jnp.sum(t * leftf, axis=-1, keepdims=True) * inv_pre
        m2 = jnp.sum(t * rightf, axis=-1, keepdims=True) * inv_pre
        d = t - (m1 * leftf + m2 * rightf)
        dd = d * d
        v1 = jnp.sum(dd * leftf, axis=-1, keepdims=True) * inv_pre
        v2 = jnp.sum(dd * rightf, axis=-1, keepdims=True) * inv_pre
        var = v1 * leftf + v2 * rightf
        h = jnp.tanh(d * jax.lax.rsqrt(var + 1e-5) * vec(2, two_pre) + vec(3, two_pre))

        # Block-diagonal second layer of both preprocessors -> [e1 | e2].
        e = jax.nn.relu(mm(h, w2_ref) + vec(4, two_post))

        # Actor trunk on cat([e1, e2]) (already lane-contiguous).
        a = jax.nn.relu(mm(e, wa1_ref) + vec(5, hidden))
        for li in range(n_extra):
            a = jax.nn.relu(mm(a, hid_refs[li]) + vec(6 + li, hidden))

        # Output layer is zero-padded to `act_pad` (=128k) lanes so this is a
        # fully unmasked, lane-dense store.  tanh already bounds mu to [-1, 1],
        # so the module's .clip(-1, 1) is a no-op.
        out_ref[...] = jnp.tanh(mm(a, wout_ref) + vec(6 + n_extra, act_pad)
                                ).astype(out_ref.dtype)

    return kernel


# ----------------------------------------------------------------------------
# Parameters (deterministic synthetic init, PyTorch Linear-style uniform)
# ----------------------------------------------------------------------------
def init_params(key, observation_length, action_length, preprocessed_dimension,
                postprocessed_dimension, z_dimension, actor_hidden_dimension,
                actor_hidden_layers):
    """Returns (packed_kernel_params, raw_unfused_params)."""
    pre, post = preprocessed_dimension, postprocessed_dimension
    hid, act = actor_hidden_dimension, action_length
    obs, zd = observation_length, z_dimension

    def linear(k, fan_in, fan_out):
        k1, k2 = jax.random.split(k)
        bound = 1.0 / jnp.sqrt(jnp.float32(fan_in))
        w = jax.random.uniform(k1, (fan_in, fan_out), jnp.float32, -bound, bound)
        b = jax.random.uniform(k2, (fan_out,), jnp.float32, -bound, bound)
        return w, b

    n_extra = actor_hidden_layers - 1
    keys = iter(jax.random.split(key, 6 + n_extra))

    wp1, bp1 = linear(next(keys), obs, pre)              # obs preprocessor L1
    wp2, bp2 = linear(next(keys), pre, post)             # obs preprocessor L2
    wq1, bq1 = linear(next(keys), obs + zd, pre)         # obs_z preprocessor L1
    wq2, bq2 = linear(next(keys), pre, post)             # obs_z preprocessor L2
    wa1, ba1 = linear(next(keys), 2 * post, hid)         # trunk L1
    hidden = [linear(next(keys), hid, hid) for _ in range(n_extra)]
    wout, bout = linear(next(keys), hid, act)            # output layer

    raw = dict(wp1=wp1, bp1=bp1, wp2=wp2, bp2=bp2, wq1=wq1, bq1=bq1,
               wq2=wq2, bq2=bq2, wa1=wa1, ba1=ba1,
               hidden=hidden, wout=wout, bout=bout)

    # Fused first layer over cat([obs, z]): [[wp1, wq1_obs], [0, wq1_z]].
    w_in = jnp.zeros((obs + zd, 2 * pre), jnp.float32)
    w_in = w_in.at[:obs, :pre].set(wp1).at[:, pre:].set(wq1)

    # Block-diagonal second layer of both preprocessors.
    w2 = jnp.zeros((2 * pre, 2 * post), jnp.float32)
    w2 = w2.at[:pre, :post].set(wp2).at[pre:, post:].set(wq2)

    # Output layer padded to a full 128-lane width -> unmasked (lane-dense) stores.
    act_pad = ((act + 127) // 128) * 128
    wout_p = jnp.zeros((hid, act_pad), jnp.float32).at[:, :act].set(wout)

    # Pack all per-feature vectors into one lane-aligned, VMEM-resident table.
    maxw = ((max(2 * pre, 2 * post, hid, act_pad) + 127) // 128) * 128
    rows = [
        jnp.concatenate([jnp.ones((pre,), jnp.float32),
                         jnp.zeros((pre,), jnp.float32)]),        # 0: left-half mask
        jnp.concatenate([bp1, bq1]),                              # 1: L1 biases
        jnp.ones((2 * pre,), jnp.float32),                        # 2: LN gamma
        jnp.zeros((2 * pre,), jnp.float32),                       # 3: LN beta
        jnp.concatenate([bp2, bq2]),                              # 4: L2 biases
        ba1,                                                      # 5: trunk L1 bias
    ] + [b for _, b in hidden] + [
        jnp.zeros((act_pad,), jnp.float32).at[:act].set(bout),    # 6+n_extra: out bias
    ]
    vecs = jnp.zeros((len(rows), maxw), jnp.float32)
    for r, v in enumerate(rows):
        vecs = vecs.at[r, :v.shape[0]].set(v)

    params = {"w_in": w_in, "w2": w2, "wa1": wa1,
              "hidden_w": [w for w, _ in hidden], "wout": wout_p, "vecs": vecs}
    return params, raw


def cast_weights(params, dtype):
    """Cast matmul weights (not biases / LN vectors / masks) to `dtype`.

    Use jnp.bfloat16 only on v6e/v7x (native bf16 VPU); accumulation stays f32.
    """
    out = dict(params)
    for k in ("w_in", "w2", "wa1", "wout"):
        out[k] = params[k].astype(dtype)
    out["hidden_w"] = [w.astype(dtype) for w in params["hidden_w"]]
    return out


# ----------------------------------------------------------------------------
# Device / batch-tile planning
# ----------------------------------------------------------------------------
def _device_kind():
    try:
        return jax.devices()[0].device_kind.lower()
    except Exception:
        return ""


def _prefer_bf16_weights():
    kind = _device_kind()
    return ("v6" in kind) or ("v7" in kind)


def _default_block_batch():
    # Bigger tiles amortize the ~0.35 us fixed per-grid-step overhead; cap where
    # vreg / VMEM pressure stays comfortable (all live activations are <=128
    # lanes wide and intermediates are consumed immediately).  This is NOT about
    # matching MXU row count -- batch rows simply stream through the MXU.
    kind = _device_kind()
    return 256 if ("v6" in kind or "v7" in kind) else 128


def _plan_batch(batch, desired):
    """Single grid step whenever the batch fits the tile; no forced splits."""
    bp8 = max(8, ((batch + 7) // 8) * 8)          # sublane-aligned batch
    bb = max(8, min((desired // 8) * 8, bp8))
    padded = ((batch + bb - 1) // bb) * bb
    return bb, padded


# ----------------------------------------------------------------------------
# Wrapper
# ----------------------------------------------------------------------------
@functools.partial(jax.jit, static_argnames=("action_length", "block_batch"))
def actor_model_forward(params, observation, z, std, *, action_length,
                        block_batch=None):
    """Deterministic (sample=False) forward: returns (action, (mu, std_tensor))."""
    B, obs_dim = observation.shape
    z_dim = z.shape[-1]
    pre = params["w2"].shape[0] // 2
    post = params["w2"].shape[1] // 2
    hidden_dim = params["wa1"].shape[1]
    act_pad = params["wout"].shape[1]
    n_extra = len(params["hidden_w"])
    compute_dtype = params["w_in"].dtype

    if block_batch is None:
        block_batch = _default_block_batch()
    bb, Bp = _plan_batch(B, block_batch)

    # cat([obs, z]) feeds the single fused first-layer matmul.  Any batch pad is
    # folded into the same concatenate (no separate pad pass).
    obsz = jnp.concatenate([observation, z], axis=-1)
    if Bp != B:
        obsz = jnp.concatenate(
            [obsz, jnp.zeros((Bp - B, obs_dim + z_dim), obsz.dtype)], axis=0)
    # TODO(synk): at very large batch this wrapper concatenate is one extra HBM
    # stream of obs/z; an in-kernel lane concat of two inputs would remove it.

    flat = [params["vecs"], params["w_in"], params["w2"], params["wa1"],
            *params["hidden_w"], params["wout"]]

    in_specs = [
        pl.BlockSpec((bb, obs_dim + z_dim), lambda i: (i, 0)),
        # grid-invariant weight/vec tables: index_map always (0,0) -> resident
    ] + [pl.BlockSpec(tuple(a.shape), lambda i: (0, 0)) for a in flat]

    param_bytes = sum(int(a.size) * a.dtype.itemsize for a in flat)
    io_bytes = 2 * bb * ((obs_dim + z_dim) * obsz.dtype.itemsize + act_pad * 4)
    # Cap below physical VMEM on v7x (64 MiB/TC) to leave compiler headroom.
    vmem_limit = int(min(48 * 1024 * 1024,
                         max(32 * 1024 * 1024,
                             2 * param_bytes + io_bytes + 8 * 1024 * 1024)))

    out = pl.pallas_call(
        _make_actor_kernel(pre, post, hidden_dim, act_pad, n_extra, compute_dtype),
        out_shape=jax.ShapeDtypeStruct((Bp, act_pad), jnp.float32),
        grid_spec=pltpu.PrefetchScalarGridSpec(
            num_scalar_prefetch=0,
            grid=(Bp // bb,),
            in_specs=in_specs,
            out_specs=pl.BlockSpec((bb, act_pad), lambda i: (i, 0)),
        ),
        compiler_params=pltpu.CompilerParams(
            dimension_semantics=("parallel",),
            vmem_limit_bytes=vmem_limit,
        ),
    )(obsz, *flat)

    action = out[:B, :action_length]
    std_t = jnp.full_like(action, std)
    # "Distribution" surrogate: (mean, std) -- what the sample=False path uses.
    return action, (action, std_t)


# ----------------------------------------------------------------------------
# Pure-JAX UNFUSED reference (mirrors the PyTorch module layer by layer)
# ----------------------------------------------------------------------------
def reference_forward(raw, observation, z, compute_dtype=jnp.float32):
    def lin(x, w, b):
        return jnp.dot(x.astype(compute_dtype), w.astype(compute_dtype),
                       preferred_element_type=jnp.float32) + b

    def ln(x, eps=1e-5):          # torch LayerNorm default init: gamma=1, beta=0
        m = jnp.mean(x, axis=-1, keepdims=True)
        v = jnp.mean(jnp.square(x - m), axis=-1, keepdims=True)
        return (x - m) * jax.lax.rsqrt(v + eps)

    e1 = jax.nn.relu(lin(jnp.tanh(ln(lin(observation, raw["wp1"], raw["bp1"]))),
                         raw["wp2"], raw["bp2"]))
    obs_z = jnp.concatenate([observation, z], axis=-1)
    e2 = jax.nn.relu(lin(jnp.tanh(ln(lin(obs_z, raw["wq1"], raw["bq1"]))),
                         raw["wq2"], raw["bq2"]))
    h = jnp.concatenate([e1, e2], axis=-1)
    a = jax.nn.relu(lin(h, raw["wa1"], raw["ba1"]))
    for w, b in raw["hidden"]:
        a = jax.nn.relu(lin(a, w, b))
    mu = jnp.tanh(lin(a, raw["wout"], raw["bout"]))
    return jnp.clip(mu, -1.0, 1.0)    # no-op after tanh; mirrors the module


# ----------------------------------------------------------------------------
if __name__ == "__main__":
    # Small shapes consistent with the module's forward.
    batch = 64
    observation_length = 16
    z_dimension = 8
    preprocessed_dimension = 32
    postprocessed_dimension = 32
    actor_hidden_dimension = 64
    actor_hidden_layers = 2
    action_length = 4
    std = 0.2  # only used by the (untranslated) sampling path / returned dist

    key = jax.random.PRNGKey(0)
    kp, ko, kz = jax.random.split(key, 3)
    params, raw = init_params(kp, observation_length, action_length,
                              preprocessed_dimension, postprocessed_dimension,
                              z_dimension, actor_hidden_dimension,
                              actor_hidden_layers)
    observation = jax.random.normal(ko, (batch, observation_length), jnp.float32)
    z = jax.random.normal(kz, (batch, z_dimension), jnp.float32)

    # f32 path, validated against the UNFUSED reference so that any packing /
    # concat-ordering mistake in the fused weights is caught.
    action, (mu, std_t) = actor_model_forward(params, observation, z, std,
                                              action_length=action_length)
    action = jax.block_until_ready(action)
    ref = reference_forward(raw, observation, z)
    assert action.shape == (batch, action_length)
    assert std_t.shape == (batch, action_length)
    assert jnp.allclose(action, ref, atol=3e-5, rtol=3e-5), \
        "f32 mismatch vs unfused reference"

    # bf16 matmul operands only where the VPU is bf16-native (v6e/v7x); on v5e
    # the extra activation casts would just add VALU work (review item).
    if _prefer_bf16_weights():
        params_bf16 = cast_weights(params, jnp.bfloat16)
        action_bf16, _ = actor_model_forward(params_bf16, observation, z, std,
                                             action_length=action_length)
        action_bf16 = jax.block_until_ready(action_bf16)
        ref_bf16 = reference_forward(raw, observation, z,
                                     compute_dtype=jnp.bfloat16)
        assert jnp.allclose(action_bf16, ref_bf16, atol=2e-2, rtol=2e-2), \
            "bf16 mismatch vs unfused reference"

    print("KERNEL_OK")
</pallas_src>

<mosaic_0001>
module attributes {stable_mosaic.version = 11 : i64} {
  func.func @kernel(%arg0: i32, %arg1: memref<64x24xf32, #tpu.memory_space<vmem>>, %arg2: memref<8x128xf32, #tpu.memory_space<vmem>>, %arg3: memref<24x64xf32, #tpu.memory_space<vmem>>, %arg4: memref<64x64xf32, #tpu.memory_space<vmem>>, %arg5: memref<64x64xf32, #tpu.memory_space<vmem>>, %arg6: memref<64x64xf32, #tpu.memory_space<vmem>>, %arg7: memref<64x128xf32, #tpu.memory_space<vmem>>, %arg8: memref<64x128xf32, #tpu.memory_space<vmem>>) attributes {dimension_semantics = [#tpu.dimension_semantics<parallel>], iteration_bounds = array<i64: 1>, scalar_prefetch = 0 : i64, scratch_operands = 0 : i64, tpu.core_type = #tpu.core_type<tc>, window_params = [{transform_indices = @transform_0, window_bounds = array<i64: 64, 24>}, {pipeline_mode = #tpu.pipeline_mode<synchronous>, transform_indices = @transform_1, window_bounds = array<i64: 8, 128>}, {pipeline_mode = #tpu.pipeline_mode<synchronous>, transform_indices = @transform_2, window_bounds = array<i64: 24, 64>}, {pipeline_mode = #tpu.pipeline_mode<synchronous>, transform_indices = @transform_3, window_bounds = array<i64: 64, 64>}, {pipeline_mode = #tpu.pipeline_mode<synchronous>, transform_indices = @transform_4, window_bounds = array<i64: 64, 64>}, {pipeline_mode = #tpu.pipeline_mode<synchronous>, transform_indices = @transform_5, window_bounds = array<i64: 64, 64>}, {pipeline_mode = #tpu.pipeline_mode<synchronous>, transform_indices = @transform_6, window_bounds = array<i64: 64, 128>}, {transform_indices = @transform_7, window_bounds = array<i64: 64, 128>}]} {
    %c0 = arith.constant 0 : index
    %c0_0 = arith.constant 0 : index
    %0 = vector.load %arg1[%c0, %c0_0] : memref<64x24xf32, #tpu.memory_space<vmem>>, vector<64x24xf32>
    %c0_1 = arith.constant 0 : index
    %c0_2 = arith.constant 0 : index
    %1 = vector.load %arg3[%c0_1, %c0_2] : memref<24x64xf32, #tpu.memory_space<vmem>>, vector<24x64xf32>
    %cst = arith.constant dense<0.000000e+00> : vector<64x64xf32>
    %2 = tpu.matmul %0, %1, %cst {dimension_numbers = #tpu.dot_dimension_numbers<[1], [0], [0], [1], [0, 0, 1, 1], [], []>} : vector<64x24xf32>, vector<24x64xf32>, vector<64x64xf32> -> vector<64x64xf32>
    %c1 = arith.constant 1 : index
    %c0_3 = arith.constant 0 : index
    %3 = vector.load %arg2[%c1, %c0_3] : memref<8x128xf32, #tpu.memory_space<vmem>>, vector<1x64xf32>
    %4 = vector.broadcast %3 : vector<1x64xf32> to vector<64x64xf32>
    %5 = arith.addf %2, %4 : vector<64x64xf32>
    %c0_4 = arith.constant 0 : index
    %c0_5 = arith.constant 0 : index
    %6 = vector.load %arg2[%c0_4, %c0_5] : memref<8x128xf32, #tpu.memory_space<vmem>>, vector<1x64xf32>
    %cst_6 = arith.constant 1.000000e+00 : f32
    %7 = vector.broadcast %cst_6 : f32 to vector<1x64xf32>
    %8 = arith.subf %7, %6 : vector<1x64xf32>
    %9 = vector.broadcast %6 : vector<1x64xf32> to vector<64x64xf32>
    %10 = arith.mulf %5, %9 : vector<64x64xf32>
    %cst_7 = arith.constant dense<0.000000e+00> : vector<64xf32>
    %11 = vector.multi_reduction <add>, %10, %cst_7 [1] : vector<64x64xf32> to vector<64xf32>
    %12 = vector.shape_cast %11 : vector<64xf32> to vector<64x1xf32>
    %cst_8 = arith.constant 3.125000e-02 : f32
    %13 = vector.broadcast %cst_8 : f32 to vector<64x1xf32>
    %14 = arith.mulf %12, %13 : vector<64x1xf32>
    %15 = vector.broadcast %8 : vector<1x64xf32> to vector<64x64xf32>
    %16 = arith.mulf %5, %15 : vector<64x64xf32>
    %cst_9 = arith.constant dense<0.000000e+00> : vector<64xf32>
    %17 = vector.multi_reduction <add>, %16, %cst_9 [1] : vector<64x64xf32> to vector<64xf32>
    %18 = vector.shape_cast %17 : vector<64xf32> to vector<64x1xf32>
    %cst_10 = arith.constant 3.125000e-02 : f32
    %19 = vector.broadcast %cst_10 : f32 to vector<64x1xf32>
    %20 = arith.mulf %18, %19 : vector<64x1xf32>
    %21 = vector.broadcast %14 : vector<64x1xf32> to vector<64x64xf32>
    %22 = vector.broadcast %6 : vector<1x64xf32> to vector<64x64xf32>
    %23 = arith.mulf %21, %22 : vector<64x64xf32>
    %24 = vector.broadcast %20 : vector<64x1xf32> to vector<64x64xf32>
    %25 = vector.broadcast %8 : vector<1x64xf32> to vector<64x64xf32>
    %26 = arith.mulf %24, %25 : vector<64x64xf32>
    %27 = arith.addf %23, %26 : vector<64x64xf32>
    %28 = arith.subf %5, %27 : vector<64x64xf32>
    %29 = arith.mulf %28, %28 : vector<64x64xf32>
    %30 = vector.broadcast %6 : vector<1x64xf32> to vector<64x64xf32>
    %31 = arith.mulf %29, %30 : vector<64x64xf32>
    %cst_11 = arith.constant dense<0.000000e+00> : vector<64xf32>
    %32 = vector.multi_reduction <add>, %31, %cst_11 [1] : vector<64x64xf32> to vector<64xf32>
    %33 = vector.shape_cast %32 : vector<64xf32> to vector<64x1xf32>
    %cst_12 = arith.constant 3.125000e-02 : f32
    %34 = vector.broadcast %cst_12 : f32 to vector<64x1xf32>
    %35 = arith.mulf %33, %34 : vector<64x1xf32>
    %36 = vector.broadcast %8 : vector<1x64xf32> to vector<64x64xf32>
    %37 = arith.mulf %29, %36 : vector<64x64xf32>
    %cst_13 = arith.constant dense<0.000000e+00> : vector<64xf32>
    %38 = vector.multi_reduction <add>, %37, %cst_13 [1] : vector<64x64xf32> to vector<64xf32>
    %39 = vector.shape_cast %38 : vector<64xf32> to vector<64x1xf32>
    %cst_14 = arith.constant 3.125000e-02 : f32
    %40 = vector.broadcast %cst_14 : f32 to vector<64x1xf32>
    %41 = arith.mulf %39, %40 : vector<64x1xf32>
    %42 = vector.broadcast %35 : vector<64x1xf32> to vector<64x64xf32>
    %43 = vector.broadcast %6 : vector<1x64xf32> to vector<64x64xf32>
    %44 = arith.mulf %42, %43 : vector<64x64xf32>
    %45 = vector.broadcast %41 : vector<64x1xf32> to vector<64x64xf32>
    %46 = vector.broadcast %8 : vector<1x64xf32> to vector<64x64xf32>
    %47 = arith.mulf %45, %46 : vector<64x64xf32>
    %48 = arith.addf %44, %47 : vector<64x64xf32>
    %cst_15 = arith.constant 9.99999974E-6 : f32
    %49 = vector.broadcast %cst_15 : f32 to vector<64x64xf32>
    %50 = arith.addf %48, %49 : vector<64x64xf32>
    %51 = math.rsqrt %50 : vector<64x64xf32>
    %52 = arith.mulf %28, %51 : vector<64x64xf32>
    %c2 = arith.constant 2 : index
    %c0_16 = arith.constant 0 : index
    %53 = vector.load %arg2[%c2, %c0_16] : memref<8x128xf32, #tpu.memory_space<vmem>>, vector<1x64xf32>
    %54 = vector.broadcast %53 : vector<1x64xf32> to vector<64x64xf32>
    %55 = arith.mulf %52, %54 : vector<64x64xf32>
    %c3 = arith.constant 3 : index
    %c0_17 = arith.constant 0 : index
    %56 = vector.load %arg2[%c3, %c0_17] : memref<8x128xf32, #tpu.memory_space<vmem>>, vector<1x64xf32>
    %57 = vector.broadcast %56 : vector<1x64xf32> to vector<64x64xf32>
    %58 = arith.addf %55, %57 : vector<64x64xf32>
    %59 = math.tanh %58 : vector<64x64xf32>
    %c0_18 = arith.constant 0 : index
    %c0_19 = arith.constant 0 : index
    %60 = vector.load %arg4[%c0_18, %c0_19] : memref<64x64xf32, #tpu.memory_space<vmem>>, vector<64x64xf32>
    %cst_20 = arith.constant dense<0.000000e+00> : vector<64x64xf32>
    %61 = tpu.matmul %59, %60, %cst_20 {dimension_numbers = #tpu.dot_dimension_numbers<[1], [0], [0], [1], [0, 0, 1, 1], [], []>} : vector<64x64xf32>, vector<64x64xf32>, vector<64x64xf32> -> vector<64x64xf32>
    %c4 = arith.constant 4 : index
    %c0_21 = arith.constant 0 : index
    %62 = vector.load %arg2[%c4, %c0_21] : memref<8x128xf32, #tpu.memory_space<vmem>>, vector<1x64xf32>
    %63 = vector.broadcast %62 : vector<1x64xf32> to vector<64x64xf32>
    %64 = arith.addf %61, %63 : vector<64x64xf32>
    %cst_22 = arith.constant 0.000000e+00 : f32
    %65 = vector.broadcast %cst_22 : f32 to vector<64x64xf32>
    %66 = arith.maximumf %64, %65 : vector<64x64xf32>
    %c0_23 = arith.constant 0 : index
    %c0_24 = arith.constant 0 : index
    %67 = vector.load %arg5[%c0_23, %c0_24] : memref<64x64xf32, #tpu.memory_space<vmem>>, vector<64x64xf32>
    %cst_25 = arith.constant dense<0.000000e+00> : vector<64x64xf32>
    %68 = tpu.matmul %66, %67, %cst_25 {dimension_numbers = #tpu.dot_dimension_numbers<[1], [0], [0], [1], [0, 0, 1, 1], [], []>} : vector<64x64xf32>, vector<64x64xf32>, vector<64x64xf32> -> vector<64x64xf32>
    %c5 = arith.constant 5 : index
    %c0_26 = arith.constant 0 : index
    %69 = vector.load %arg2[%c5, %c0_26] : memref<8x128xf32, #tpu.memory_space<vmem>>, vector<1x64xf32>
    %70 = vector.broadcast %69 : vector<1x64xf32> to vector<64x64xf32>
    %71 = arith.addf %68, %70 : vector<64x64xf32>
    %cst_27 = arith.constant 0.000000e+00 : f32
    %72 = vector.broadcast %cst_27 : f32 to vector<64x64xf32>
    %73 = arith.maximumf %71, %72 : vector<64x64xf32>
    %c0_28 = arith.constant 0 : index
    %c0_29 = arith.constant 0 : index
    %74 = vector.load %arg6[%c0_28, %c0_29] : memref<64x64xf32, #tpu.memory_space<vmem>>, vector<64x64xf32>
    %cst_30 = arith.constant dense<0.000000e+00> : vector<64x64xf32>
    %75 = tpu.matmul %73, %74, %cst_30 {dimension_numbers = #tpu.dot_dimension_numbers<[1], [0], [0], [1], [0, 0, 1, 1], [], []>} : vector<64x64xf32>, vector<64x64xf32>, vector<64x64xf32> -> vector<64x64xf32>
    %c6 = arith.constant 6 : index
    %c0_31 = arith.constant 0 : index
    %76 = vector.load %arg2[%c6, %c0_31] : memref<8x128xf32, #tpu.memory_space<vmem>>, vector<1x64xf32>
    %77 = vector.broadcast %76 : vector<1x64xf32> to vector<64x64xf32>
    %78 = arith.addf %75, %77 : vector<64x64xf32>
    %cst_32 = arith.constant 0.000000e+00 : f32
    %79 = vector.broadcast %cst_32 : f32 to vector<64x64xf32>
    %80 = arith.maximumf %78, %79 : vector<64x64xf32>
    %c0_33 = arith.constant 0 : index
    %c0_34 = arith.constant 0 : index
    %81 = vector.load %arg7[%c0_33, %c0_34] : memref<64x128xf32, #tpu.memory_space<vmem>>, vector<64x128xf32>
    %cst_35 = arith.constant dense<0.000000e+00> : vector<64x128xf32>
    %82 = tpu.matmul %80, %81, %cst_35 {dimension_numbers = #tpu.dot_dimension_numbers<[1], [0], [0], [1], [0, 0, 1, 1], [], []>} : vector<64x64xf32>, vector<64x128xf32>, vector<64x128xf32> -> vector<64x128xf32>
    %c7 = arith.constant 7 : index
    %c0_36 = arith.constant 0 : index
    %83 = vector.load %arg2[%c7, %c0_36] : memref<8x128xf32, #tpu.memory_space<vmem>>, vector<1x128xf32>
    %84 = vector.broadcast %83 : vector<1x128xf32> to vector<64x128xf32>
    %85 = arith.addf %82, %84 : vector<64x128xf32>
    %86 = math.tanh %85 : vector<64x128xf32>
    %c0_37 = arith.constant 0 : index
    %c0_38 = arith.constant 0 : index
    %87 = vector.load %arg8[%c0_37, %c0_38] : memref<64x128xf32, #tpu.memory_space<vmem>>, vector<64x128xf32>
    tpu.vector_store %arg8[%c0_37, %c0_38], %86 {strides = array<i32>} : memref<64x128xf32, #tpu.memory_space<vmem>>, vector<64x128xf32>,
    return
  }
  func.func @transform_0(%arg0: i32) -> (i32, i32) {
    %c0_i32 = arith.constant 0 : i32
    %c0_i32_0 = arith.constant 0 : i32
    return %arg0, %c0_i32 : i32, i32
  }
  func.func @transform_1(%arg0: i32) -> (i32, i32) {
    %c0_i32 = arith.constant 0 : i32
    %c0_i32_0 = arith.constant 0 : i32
    %c0_i32_1 = arith.constant 0 : i32
    return %c0_i32, %c0_i32_0 : i32, i32
  }
  func.func @transform_2(%arg0: i32) -> (i32, i32) {
    %c0_i32 = arith.constant 0 : i32
    %c0_i32_0 = arith.constant 0 : i32
    %c0_i32_1 = arith.constant 0 : i32
    return %c0_i32, %c0_i32_0 : i32, i32
  }
  func.func @transform_3(%arg0: i32) -> (i32, i32) {
    %c0_i32 = arith.constant 0 : i32
    %c0_i32_0 = arith.constant 0 : i32
    %c0_i32_1 = arith.constant 0 : i32
    return %c0_i32, %c0_i32_0 : i32, i32
  }
  func.func @transform_4(%arg0: i32) -> (i32, i32) {
    %c0_i32 = arith.constant 0 : i32
    %c0_i32_0 = arith.constant 0 : i32
    %c0_i32_1 = arith.constant 0 : i32
    return %c0_i32, %c0_i32_0 : i32, i32
  }
  func.func @transform_5(%arg0: i32) -> (i32, i32) {
    %c0_i32 = arith.constant 0 : i32
    %c0_i32_0 = arith.constant 0 : i32
    %c0_i32_1 = arith.constant 0 : i32
    return %c0_i32, %c0_i32_0 : i32, i32
  }
  func.func @transform_6(%arg0: i32) -> (i32, i32) {
    %c0_i32 = arith.constant 0 : i32
    %c0_i32_0 = arith.constant 0 : i32
    %c0_i32_1 = arith.constant 0 : i32
    return %c0_i32, %c0_i32_0 : i32, i32
  }
  func.func @transform_7(%arg0: i32) -> (i32, i32) {
    %c0_i32 = arith.constant 0 : i32
    %c0_i32_0 = arith.constant 0 : i32
    return %arg0, %c0_i32 : i32, i32
  }
}

</mosaic_0001>

<llo_original>
// kernel: actor_model_forward.1
$region0: #{actor_model_forward.1}
  #allocation0 [shape = 'u32[]', space=smem, size = 0x4, offset = 0x4, fixed_abs, tag = 'smem constant byte address 0x4 - core index']
  #allocation1 [shape = 'u32[72,128]{1,0:T(1,128)}', space=vmem, size = 0x9000, scoped, tag = 'internal scratch']
  %s0 = inlined_call_operand.vmem [shape: f32[64,24], index: 0, kind: input, shape index: {}]
  %s1 = inlined_call_operand.vmem [shape: f32[8,128], index: 1, kind: input, shape index: {}]
  %s2 = inlined_call_operand.hbm [shape: f32[24,64], index: 2, kind: input, shape index: {}]
  %s3 = inlined_call_operand.vmem [shape: f32[64,64], index: 3, kind: input, shape index: {}]
  %s4 = inlined_call_operand.vmem [shape: f32[64,64], index: 4, kind: input, shape index: {}]
  %s5 = inlined_call_operand.hbm [shape: f32[64,64], index: 5, kind: input, shape index: {}]
  %s6 = inlined_call_operand.hbm [shape: f32[64,128], index: 6, kind: input, shape index: {}]
  %s7 = inlined_call_operand.vmem [shape: f32[64,128], index: 7, kind: output, shape index: {}]
  %s8 = sld [smem:[#allocation0]]
  $region50: #{actor_model_forward.1} parent=0
    _
  %s10 = ssub.s32 1, %s8
  %s11 = scalar_select 0, %s10, %s8
  $region1: #{actor_model_forward.1} parent=0
    #allocation2 [shape = 'u8[12288]{0}', space=vmem, size = 0x3000, scoped, tag = 'input window, operand 2, single buffered']
    #allocation3 [shape = 's32[1]{0}', space=sflag, size = 0x4, scoped, tag = 'scoped memory for actor_model_forward.1']
    #allocation4 [shape = 'u8[32768]{0}', space=vmem, size = 0x8000, scoped, tag = 'input window, operand 5, single buffered']
    #allocation5 [shape = 's32[1]{0}', space=sflag, size = 0x4, scoped, tag = 'scoped memory for actor_model_forward.1']
    #allocation6 [shape = 'u8[32768]{0}', space=vmem, size = 0x8000, scoped, tag = 'input window, operand 6, single buffered']
    %12 = vsyncpa [#allocation3], 0
    %13 = vsyncpa [#allocation5], 0
    // Predicated region
    $region2: #{actor_model_forward.1} parent=1 // pred_check
      _
    $region3: #{actor_model_forward.1} parent=1 // pred_check_branch
      %15 = sbr.rel (0) target = $region5
    $region4: #{actor_model_forward.1} parent=1 // pred_region
      _
    $region5: #{actor_model_forward.1} parent=1 // pred_fallthru
      _
    // Predicated region
    $region6: #{actor_model_forward.1} parent=1 // pred_check
      _
    $region7: #{actor_model_forward.1} parent=1 // pred_check_branch
      %17 = sbr.rel (0) target = $region9
    $region8: #{actor_model_forward.1} parent=1 // pred_region
      _
    $region9: #{actor_model_forward.1} parent=1 // pred_fallthru
      _
    // Predicated region
    $region10: #{actor_model_forward.1} parent=1 // pred_check
      _
    $region11: #{actor_model_forward.1} parent=1 // pred_check_branch
      %19 = sbr.rel (0) target = $region13
    $region12: #{actor_model_forward.1} parent=1 // pred_region
      %21 = vsyncadd [#allocation3], 0
      %s22 = sshll.u32 %s2, 4
      %s23 = int_to_ptr.hbm [resolvable:$true] %s22
      %s24 = sshll.u32 [#allocation2], 4
      %s25 = int_to_ptr.vmem [resolvable:$true] %s24
      %30 = dma.hbm_to_vmem [thread:$0]  %s23, 384, %s25, [#allocation3], 128, 128, 8
    $region13: #{actor_model_forward.1} parent=1 // pred_fallthru
      _
    // Predicated region
    $region14: #{actor_model_forward.1} parent=1 // pred_check
      _
    $region15: #{actor_model_forward.1} parent=1 // pred_check_branch
      %32 = sbr.rel (0) target = $region17
    $region16: #{actor_model_forward.1} parent=1 // pred_region
      _
    $region17: #{actor_model_forward.1} parent=1 // pred_fallthru
      _
    // Predicated region
    $region18: #{actor_model_forward.1} parent=1 // pred_check
      _
    $region19: #{actor_model_forward.1} parent=1 // pred_check_branch
      %34 = sbr.rel (0) target = $region21
    $region20: #{actor_model_forward.1} parent=1 // pred_region
      _
    $region21: #{actor_model_forward.1} parent=1 // pred_fallthru
      _
    // Predicated region
    $region22: #{actor_model_forward.1} parent=1 // pred_check
      _
    $region23: #{actor_model_forward.1} parent=1 // pred_check_branch
      %36 = sbr.rel (0) target = $region25
    $region24: #{actor_model_forward.1} parent=1 // pred_region
      %38 = vsyncadd [#allocation5], 0
      %s39 = sshll.u32 %s5, 4
      %s40 = int_to_ptr.hbm [resolvable:$true] %s39
      %s41 = sshll.u32 [#allocation4], 4
      %s42 = int_to_ptr.vmem [resolvable:$true] %s41
      %47 = dma.hbm_to_vmem [thread:$0]  %s40, 1024, %s42, [#allocation5], 128, 128, 8
    $region25: #{actor_model_forward.1} parent=1 // pred_fallthru
      _
    // Predicated region
    $region26: #{actor_model_forward.1} parent=1 // pred_check
      _
    $region27: #{actor_model_forward.1} parent=1 // pred_check_branch
      %49 = sbr.rel (0) target = $region29
    $region28: #{actor_model_forward.1} parent=1 // pred_region
      %51 = vsyncadd [#allocation5], 0
      %s52 = sshll.u32 %s6, 4
      %s53 = int_to_ptr.hbm [resolvable:$true] %s52
      %s54 = sshll.u32 [#allocation6], 4
      %s55 = int_to_ptr.vmem [resolvable:$true] %s54
      %60 = dma.hbm_to_vmem [thread:$0]  %s53, 1024, %s55, [#allocation5], 128, 128, 8
    $region29: #{actor_model_forward.1} parent=1 // pred_fallthru
      _
    // Predicated region
    $region30: #{actor_model_forward.1} parent=1 // pred_check
      _
    $region31: #{actor_model_forward.1} parent=1 // pred_check_branch
      %62 = sbr.rel (0) target = $region33
    $region32: #{actor_model_forward.1} parent=1 // pred_region
      %64 = dma.done [#allocation3], 384
    $region33: #{actor_model_forward.1} parent=1 // pred_fallthru
      _
    // Predicated region
    $region34: #{actor_model_forward.1} parent=1 // pred_check
      _
    $region35: #{actor_model_forward.1} parent=1 // pred_check_branch
      %66 = sbr.rel (0) target = $region37
    $region36: #{actor_model_forward.1} parent=1 // pred_region
      %68 = dma.done [#allocation5], 1024
    $region37: #{actor_model_forward.1} parent=1 // pred_fallthru
      _
    // Predicated region
    $region38: #{actor_model_forward.1} parent=1 // pred_check
      _
    $region39: #{actor_model_forward.1} parent=1 // pred_check_branch
      %70 = sbr.rel (0) target = $region41
    $region40: #{actor_model_forward.1} parent=1 // pred_region
      %72 = dma.done [#allocation5], 1024
    $region41: #{actor_model_forward.1} parent=1 // pred_fallthru
      _
    %v73 = vld [vmem:[%s0] sm:$0xff]
    %v74 = vld [vmem:[%s0 + $0x8] sm:$0xff]
    %v75 = vld [vmem:[%s0 + $0x10] sm:$0xff]
    %v76 = vld [vmem:[%s0 + $0x18] sm:$0xff]
    %v77 = vld [vmem:[%s0 + $0x20] sm:$0xff]
    %v78 = vld [vmem:[%s0 + $0x28] sm:$0xff]
    %v79 = vld [vmem:[%s0 + $0x30] sm:$0xff]
    %v80 = vld [vmem:[%s0 + $0x38] sm:$0xff]
    %v81 = vld [vmem:[#allocation2] sm:$0xff]
    %v82 = vld [vmem:[#allocation2 + $0x8] sm:$0xff]
    %v83 = vld [vmem:[#allocation2 + $0x10] sm:$0xff]
    %v84 = vld [vmem:[%s1 + $0x1] sm:$0x1]
    %v85 = vperm.slane %v84, 0
    %vm86 = vcmask 195584
    %v88 = vsel %vm86, %v73, 0
    %v91 = vsel %vm86, %v74, 0
    %v94 = vsel %vm86, %v75, 0
    %v97 = vsel %vm86, %v76, 0
    %v100 = vsel %vm86, %v77, 0
    %v103 = vsel %vm86, %v78, 0
    %v106 = vsel %vm86, %v79, 0
    %v109 = vsel %vm86, %v80, 0
    %111 = vmatpush.msra.mxu0 0.0
    %112 = vmatpush.msra.mxu0 0.0
    %113 = vmatpush.msra.mxu0 0.0
    %114 = vmatpush.msra.mxu0 0.0
    %115 = vmatpush.msra.mxu0 0.0
    %116 = vmatpush.msra.mxu0 0.0
    %117 = vmatpush.msra.mxu0 0.0
    %118 = vmatpush.msra.mxu0 0.0
    %119 = vmatpush.msra.mxu0 0.0
    %120 = vmatpush.msra.mxu0 0.0
    %121 = vmatpush.msra.mxu0 0.0
    %122 = vmatpush.msra.mxu0 0.0
    %123 = vmatpush.msra.mxu0 0.0
    %124 = vmatpush.msra.mxu0 %v83
    %125 = vmatpush.msra.mxu0 %v82
    %126 = vmatpush.msra.mxu0 %v81
    %127 = vmatmul.f32.gmra.mxu0 %v88
    %v128 = vpop.f32.mrf.mxu0
    %v129 = vadd.f32 %v85, %v128
    %130 = vmatmul.f32.gmra.mxu0 %v91
    %v131 = vpop.f32.mrf.mxu0
    %v132 = vadd.f32 %v85, %v131
    %133 = vmatmul.f32.gmra.mxu0 %v94
    %v134 = vpop.f32.mrf.mxu0
    %v135 = vadd.f32 %v85, %v134
    %136 = vmatmul.f32.gmra.mxu0 %v97
    %v137 = vpop.f32.mrf.mxu0
    %v138 = vadd.f32 %v85, %v137
    %139 = vmatmul.f32.gmra.mxu0 %v100
    %v140 = vpop.f32.mrf.mxu0
    %v141 = vadd.f32 %v85, %v140
    %142 = vmatmul.f32.gmra.mxu0 %v103
    %v143 = vpop.f32.mrf.mxu0
    %v144 = vadd.f32 %v85, %v143
    %145 = vmatmul.f32.gmra.mxu0 %v106
    %v146 = vpop.f32.mrf.mxu0
    %v147 = vadd.f32 %v85, %v146
    %148 = vmatmul.f32.gmra.mxu0 %v109
    %v149 = vpop.f32.mrf.mxu0
    %v150 = vadd.f32 %v85, %v149
    %151 = vdwg.mxu0
    %v152 = vld [vmem:[%s1] sm:$0x1]
    %v153 = vsub.f32 1.0, %v152
    %v154 = vperm.slane %v152, 0
    %v155 = vmul.f32 %v129, %v154
    %v156 = vmul.f32 %v132, %v154
    %v157 = vmul.f32 %v135, %v154
    %v158 = vmul.f32 %v138, %v154
    %v159 = vmul.f32 %v141, %v154
    %v160 = vmul.f32 %v144, %v154
    %v161 = vmul.f32 %v147, %v154
    %v162 = vmul.f32 %v150, %v154
    %vm163 = vcmask 523264
    %v164 = vsel %vm163, %v155, 0.0
    %165 = vadd.xlane.f32.xlu0 %v164
    %v166 = vpop.xlane.xlu0 %165
    %v167 = vsel %vm163, %v156, 0.0
    %168 = vadd.xlane.f32.xlu0 %v167
    %v169 = vpop.xlane.xlu0 %168
    %v170 = vsel %vm163, %v157, 0.0
    %171 = vadd.xlane.f32.xlu0 %v170
    %v172 = vpop.xlane.xlu0 %171
    %v173 = vsel %vm163, %v158, 0.0
    %174 = vadd.xlane.f32.xlu0 %v173
    %v175 = vpop.xlane.xlu0 %174
    %v176 = vsel %vm163, %v159, 0.0
    %177 = vadd.xlane.f32.xlu0 %v176
    %v178 = vpop.xlane.xlu0 %177
    %v179 = vsel %vm163, %v160, 0.0
    %180 = vadd.xlane.f32.xlu0 %v179
    %v181 = vpop.xlane.xlu0 %180
    %v182 = vsel %vm163, %v161, 0.0
    %183 = vadd.xlane.f32.xlu0 %v182
    %v184 = vpop.xlane.xlu0 %183
    %v185 = vsel %vm163, %v162, 0.0
    %186 = vadd.xlane.f32.xlu0 %v185
    %v187 = vpop.xlane.xlu0 %186
    %v188 = vmul.f32 %v166, 0.03125
    %v189 = vmul.f32 %v169, 0.03125
    %v190 = vmul.f32 %v172, 0.03125
    %v191 = vmul.f32 %v175, 0.03125
    %v192 = vmul.f32 %v178, 0.03125
    %v193 = vmul.f32 %v181, 0.03125
    %v194 = vmul.f32 %v184, 0.03125
    %v195 = vmul.f32 %v187, 0.03125
    %v196 = vperm.slane %v153, 0
    %v197 = vmul.f32 %v129, %v196
    %v198 = vmul.f32 %v132, %v196
    %v199 = vmul.f32 %v135, %v196
    %v200 = vmul.f32 %v138, %v196
    %v201 = vmul.f32 %v141, %v196
    %v202 = vmul.f32 %v144, %v196
    %v203 = vmul.f32 %v147, %v196
    %v204 = vmul.f32 %v150, %v196
    %v205 = vsel %vm163, %v197, 0.0
    %206 = vadd.xlane.f32.xlu0 %v205
    %v207 = vpop.xlane.xlu0 %206
    %v208 = vsel %vm163, %v198, 0.0
    %209 = vadd.xlane.f32.xlu0 %v208
    %v210 = vpop.xlane.xlu0 %209
    %v211 = vsel %vm163, %v199, 0.0
    %212 = vadd.xlane.f32.xlu0 %v211
    %v213 = vpop.xlane.xlu0 %212
    %v214 = vsel %vm163, %v200, 0.0
    %215 = vadd.xlane.f32.xlu0 %v214
    %v216 = vpop.xlane.xlu0 %215
    %v217 = vsel %vm163, %v201, 0.0
    %218 = vadd.xlane.f32.xlu0 %v217
    %v219 = vpop.xlane.xlu0 %218
    %v220 = vsel %vm163, %v202, 0.0
    %221 = vadd.xlane.f32.xlu0 %v220
    %v222 = vpop.xlane.xlu0 %221
    %v223 = vsel %vm163, %v203, 0.0
    %224 = vadd.xlane.f32.xlu0 %v223
    %v225 = vpop.xlane.xlu0 %224
    %v226 = vsel %vm163, %v204, 0.0
    %227 = vadd.xlane.f32.xlu0 %v226
    %v228 = vpop.xlane.xlu0 %227
    %v229 = vmul.f32 %v207, 0.03125
    %v230 = vmul.f32 %v210, 0.03125
    %v231 = vmul.f32 %v213, 0.03125
    %v232 = vmul.f32 %v216, 0.03125
    %v233 = vmul.f32 %v219, 0.03125
    %v234 = vmul.f32 %v222, 0.03125
    %v235 = vmul.f32 %v225, 0.03125
    %v236 = vmul.f32 %v228, 0.03125
    %v237 = vmul.f32 %v188, %v154
    %v238 = vmul.f32 %v189, %v154
    %v239 = vmul.f32 %v190, %v154
    %v240 = vmul.f32 %v191, %v154
    %v241 = vmul.f32 %v192, %v154
    %v242 = vmul.f32 %v193, %v154
    %v243 = vmul.f32 %v194, %v154
    %v244 = vmul.f32 %v195, %v154
    %v245 = vmul.f32 %v229, %v196
    %v246 = vmul.f32 %v230, %v196
    %v247 = vmul.f32 %v231, %v196
    %v248 = vmul.f32 %v232, %v196
    %v249 = vmul.f32 %v233, %v196
    %v250 = vmul.f32 %v234, %v196
    %v251 = vmul.f32 %v235, %v196
    %v252 = vmul.f32 %v236, %v196
    %v253 = vadd.f32 %v237, %v245
    %v254 = vadd.f32 %v238, %v246
    %v255 = vadd.f32 %v239, %v247
    %v256 = vadd.f32 %v240, %v248
    %v257 = vadd.f32 %v241, %v249
    %v258 = vadd.f32 %v242, %v250
    %v259 = vadd.f32 %v243, %v251
    %v260 = vadd.f32 %v244, %v252
    %v261 = vsub.f32 %v129, %v253
    %v262 = vsub.f32 %v132, %v254
    %v263 = vsub.f32 %v135, %v255
    %v264 = vsub.f32 %v138, %v256
    %v265 = vsub.f32 %v141, %v257
    %v266 = vsub.f32 %v144, %v258
    %v267 = vsub.f32 %v147, %v259
    %v268 = vsub.f32 %v150, %v260
    %v269 = vmul.f32 %v261, %v261
    %v270 = vmul.f32 %v262, %v262
    %v271 = vmul.f32 %v263, %v263
    %v272 = vmul.f32 %v264, %v264
    %v273 = vmul.f32 %v265, %v265
    %v274 = vmul.f32 %v266, %v266
    %v275 = vmul.f32 %v267, %v267
    %v276 = vmul.f32 %v268, %v268
    %v277 = vmul.f32 %v269, %v154
    %v278 = vmul.f32 %v270, %v154
    %v279 = vmul.f32 %v271, %v154
    %v280 = vmul.f32 %v272, %v154
    %v281 = vmul.f32 %v273, %v154
    %v282 = vmul.f32 %v274, %v154
    %v283 = vmul.f32 %v275, %v154
    %v284 = vmul.f32 %v276, %v154
    %v285 = vsel %vm163, %v277, 0.0
    %286 = vadd.xlane.f32.xlu0 %v285
    %v287 = vpop.xlane.xlu0 %286
    %v288 = vsel %vm163, %v278, 0.0
    %289 = vadd.xlane.f32.xlu0 %v288
    %v290 = vpop.xlane.xlu0 %289
    %v291 = vsel %vm163, %v279, 0.0
    %292 = vadd.xlane.f32.xlu0 %v291
    %v293 = vpop.xlane.xlu0 %292
    %v294 = vsel %vm163, %v280, 0.0
    %295 = vadd.xlane.f32.xlu0 %v294
    %v296 = vpop.xlane.xlu0 %295
    %v297 = vsel %vm163, %v281, 0.0
    %298 = vadd.xlane.f32.xlu0 %v297
    %v299 = vpop.xlane.xlu0 %298
    %v300 = vsel %vm163, %v282, 0.0
    %301 = vadd.xlane.f32.xlu0 %v300
    %v302 = vpop.xlane.xlu0 %301
    %v303 = vsel %vm163, %v283, 0.0
    %304 = vadd.xlane.f32.xlu0 %v303
    %v305 = vpop.xlane.xlu0 %304
    %v306 = vsel %vm163, %v284, 0.0
    %307 = vadd.xlane.f32.xlu0 %v306
    %v308 = vpop.xlane.xlu0 %307
    %v309 = vmul.f32 %v287, 0.03125
    %v310 = vmul.f32 %v290, 0.03125
    %v311 = vmul.f32 %v293, 0.03125
    %v312 = vmul.f32 %v296, 0.03125
    %v313 = vmul.f32 %v299, 0.03125
    %v314 = vmul.f32 %v302, 0.03125
    %v315 = vmul.f32 %v305, 0.03125
    %v316 = vmul.f32 %v308, 0.03125
    %v317 = vmul.f32 %v269, %v196
    %v318 = vmul.f32 %v270, %v196
    %v319 = vmul.f32 %v271, %v196
    %v320 = vmul.f32 %v272, %v196
    %v321 = vmul.f32 %v273, %v196
    %v322 = vmul.f32 %v274, %v196
    %v323 = vmul.f32 %v275, %v196
    %v324 = vmul.f32 %v276, %v196
    %v325 = vsel %vm163, %v317, 0.0
    %326 = vadd.xlane.f32.xlu0 %v325
    %v327 = vpop.xlane.xlu0 %326
    %v328 = vsel %vm163, %v318, 0.0
    %329 = vadd.xlane.f32.xlu0 %v328
    %v330 = vpop.xlane.xlu0 %329
    %v331 = vsel %vm163, %v319, 0.0
    %332 = vadd.xlane.f32.xlu0 %v331
    %v333 = vpop.xlane.xlu0 %332
    %v334 = vsel %vm163, %v320, 0.0
    %335 = vadd.xlane.f32.xlu0 %v334
    %v336 = vpop.xlane.xlu0 %335
    %v337 = vsel %vm163, %v321, 0.0
    %338 = vadd.xlane.f32.xlu0 %v337
    %v339 = vpop.xlane.xlu0 %338
    %v340 = vsel %vm163, %v322, 0.0
    %341 = vadd.xlane.f32.xlu0 %v340
    %v342 = vpop.xlane.xlu0 %341
    %v343 = vsel %vm163, %v323, 0.0
    %344 = vadd.xlane.f32.xlu0 %v343
    %v345 = vpop.xlane.xlu0 %344
    %v346 = vsel %vm163, %v324, 0.0
    %347 = vadd.xlane.f32.xlu0 %v346
    %v348 = vpop.xlane.xlu0 %347
    %v349 = vmul.f32 %v327, 0.03125
    %v350 = vmul.f32 %v330, 0.03125
    %v351 = vmul.f32 %v333, 0.03125
    %v352 = vmul.f32 %v336, 0.03125
    %v353 = vmul.f32 %v339, 0.03125
    %v354 = vmul.f32 %v342, 0.03125
    %v355 = vmul.f32 %v345, 0.03125
    %v356 = vmul.f32 %v348, 0.03125
    %v357 = vmul.f32 %v309, %v154
    %v358 = vmul.f32 %v310, %v154
    %v359 = vmul.f32 %v311, %v154
    %v360 = vmul.f32 %v312, %v154
    %v361 = vmul.f32 %v313, %v154
    %v362 = vmul.f32 %v314, %v154
    %v363 = vmul.f32 %v315, %v154
    %v364 = vmul.f32 %v316, %v154
    %v365 = vmul.f32 %v349, %v196
    %v366 = vmul.f32 %v350, %v196
    %v367 = vmul.f32 %v351, %v196
    %v368 = vmul.f32 %v352, %v196
    %v369 = vmul.f32 %v353, %v196
    %v370 = vmul.f32 %v354, %v196
    %v371 = vmul.f32 %v355, %v196
    %v372 = vmul.f32 %v356, %v196
    %v373 = vadd.f32 %v357, %v365
    %v374 = vadd.f32 %v358, %v366
    %v375 = vadd.f32 %v359, %v367
    %v376 = vadd.f32 %v360, %v368
    %v377 = vadd.f32 %v361, %v369
    %v378 = vadd.f32 %v362, %v370
    %v379 = vadd.f32 %v363, %v371
    %v380 = vadd.f32 %v364, %v372
    %v381 = vadd.f32 %v373, 1e-05
    %v382 = vadd.f32 %v374, 1e-05
    %v383 = vadd.f32 %v375, 1e-05
    %v384 = vadd.f32 %v376, 1e-05
    %v385 = vadd.f32 %v377, 1e-05
    %v386 = vadd.f32 %v378, 1e-05
    %v387 = vadd.f32 %v379, 1e-05
    %v388 = vadd.f32 %v380, 1e-05
    %v389 = vrsqrt.pop %v381
    %v390 = vmul.f32 %v389, %v381
    %v391 = vmul.f32 %v390, %v389
    %v392 = vmul.f32 0.5, %v391
    %v393 = vsub.f32 1.5, %v392
    %v394 = vmul.f32 %v389, %v393
    %vm395 = vweird.f32 %v381
    %vm396 = vweird.f32 %v389
    %vm397 = vmor %vm395, %vm396
    %v398 = vsel %vm397, %v389, %v394
    %v399 = vrsqrt.pop %v382
    %v400 = vmul.f32 %v399, %v382
    %v401 = vmul.f32 %v400, %v399
    %v402 = vmul.f32 0.5, %v401
    %v403 = vsub.f32 1.5, %v402
    %v404 = vmul.f32 %v399, %v403
    %vm405 = vweird.f32 %v382
    %vm406 = vweird.f32 %v399
    %vm407 = vmor %vm405, %vm406
    %v408 = vsel %vm407, %v399, %v404
    %v409 = vrsqrt.pop %v383
    %v410 = vmul.f32 %v409, %v383
    %v411 = vmul.f32 %v410, %v409
    %v412 = vmul.f32 0.5, %v411
    %v413 = vsub.f32 1.5, %v412
    %v414 = vmul.f32 %v409, %v413
    %vm415 = vweird.f32 %v383
    %vm416 = vweird.f32 %v409
    %vm417 = vmor %vm415, %vm416
    %v418 = vsel %vm417, %v409, %v414
    %v419 = vrsqrt.pop %v384
    %v420 = vmul.f32 %v419, %v384
    %v421 = vmul.f32 %v420, %v419
    %v422 = vmul.f32 0.5, %v421
    %v423 = vsub.f32 1.5, %v422
    %v424 = vmul.f32 %v419, %v423
    %vm425 = vweird.f32 %v384
    %vm426 = vweird.f32 %v419
    %vm427 = vmor %vm425, %vm426
    %v428 = vsel %vm427, %v419, %v424
    %v429 = vrsqrt.pop %v385
    %v430 = vmul.f32 %v429, %v385
    %v431 = vmul.f32 %v430, %v429
    %v432 = vmul.f32 0.5, %v431
    %v433 = vsub.f32 1.5, %v432
    %v434 = vmul.f32 %v429, %v433
    %vm435 = vweird.f32 %v385
    %vm436 = vweird.f32 %v429
    %vm437 = vmor %vm435, %vm436
    %v438 = vsel %vm437, %v429, %v434
    %v439 = vrsqrt.pop %v386
    %v440 = vmul.f32 %v439, %v386
    %v441 = vmul.f32 %v440, %v439
    %v442 = vmul.f32 0.5, %v441
    %v443 = vsub.f32 1.5, %v442
    %v444 = vmul.f32 %v439, %v443
    %vm445 = vweird.f32 %v386
    %vm446 = vweird.f32 %v439
    %vm447 = vmor %vm445, %vm446
    %v448 = vsel %vm447, %v439, %v444
    %v449 = vrsqrt.pop %v387
    %v450 = vmul.f32 %v449, %v387
    %v451 = vmul.f32 %v450, %v449
    %v452 = vmul.f32 0.5, %v451
    %v453 = vsub.f32 1.5, %v452
    %v454 = vmul.f32 %v449, %v453
    %vm455 = vweird.f32 %v387
    %vm456 = vweird.f32 %v449
    %vm457 = vmor %vm455, %vm456
    %v458 = vsel %vm457, %v449, %v454
    %v459 = vrsqrt.pop %v388
    %v460 = vmul.f32 %v459, %v388
    %v461 = vmul.f32 %v460, %v459
    %v462 = vmul.f32 0.5, %v461
    %v463 = vsub.f32 1.5, %v462
    %v464 = vmul.f32 %v459, %v463
    %vm465 = vweird.f32 %v388
    %vm466 = vweird.f32 %v459
    %vm467 = vmor %vm465, %vm466
    %v468 = vsel %vm467, %v459, %v464
    %v469 = vmul.f32 %v261, %v398
    %v470 = vmul.f32 %v262, %v408
    %v471 = vmul.f32 %v263, %v418
    %v472 = vmul.f32 %v264, %v428
    %v473 = vmul.f32 %v265, %v438
    %v474 = vmul.f32 %v266, %v448
    %v475 = vmul.f32 %v267, %v458
    %v476 = vmul.f32 %v268, %v468
    %v477 = vld [vmem:[%s1 + $0x2] sm:$0x1]
    %v478 = vperm.slane %v477, 0
    %v479 = vmul.f32 %v469, %v478
    %v480 = vmul.f32 %v470, %v478
    %v481 = vmul.f32 %v471, %v478
    %v482 = vmul.f32 %v472, %v478
    %v483 = vmul.f32 %v473, %v478
    %v484 = vmul.f32 %v474, %v478
    %v485 = vmul.f32 %v475, %v478
    %v486 = vmul.f32 %v476, %v478
    %v487 = vld [vmem:[%s1 + $0x3] sm:$0x1]
    %v488 = vperm.slane %v487, 0
    %v489 = vadd.f32 %v479, %v488
    %v490 = vadd.f32 %v480, %v488
    %v491 = vadd.f32 %v481, %v488
    %v492 = vadd.f32 %v482, %v488
    %v493 = vadd.f32 %v483, %v488
    %v494 = vadd.f32 %v484, %v488
    %v495 = vadd.f32 %v485, %v488
    %v496 = vadd.f32 %v486, %v488
    %v497 = vtanh.pop %v489
    %v498 = vtanh.pop %v490
    %v499 = vtanh.pop %v491
    %v500 = vtanh.pop %v492
    %v501 = vtanh.pop %v493
    %v502 = vtanh.pop %v494
    %v503 = vtanh.pop %v495
    %v504 = vtanh.pop %v496
    %v505 = vld [vmem:[%s3] sm:$0xff]
    %v506 = vld [vmem:[%s3 + $0x8] sm:$0xff]
    %v507 = vld [vmem:[%s3 + $0x10] sm:$0xff]
    %v508 = vld [vmem:[%s3 + $0x18] sm:$0xff]
    %v509 = vld [vmem:[%s3 + $0x20] sm:$0xff]
    %v510 = vld [vmem:[%s3 + $0x28] sm:$0xff]
    %v511 = vld [vmem:[%s3 + $0x30] sm:$0xff]
    %v512 = vld [vmem:[%s3 + $0x38] sm:$0xff]
    %v513 = vld [vmem:[%s1 + $0x4] sm:$0x1]
    %v514 = vperm.slane %v513, 0
    %v516 = vsel %vm163, %v497, 0
    %v519 = vsel %vm163, %v498, 0
    %v522 = vsel %vm163, %v499, 0
    %v525 = vsel %vm163, %v500, 0
    %v528 = vsel %vm163, %v501, 0
    %v531 = vsel %vm163, %v502, 0
    %v534 = vsel %vm163, %v503, 0
    %v537 = vsel %vm163, %v504, 0
    %539 = vmatpush.msra.mxu0 0.0
    %540 = vmatpush.msra.mxu0 0.0
    %541 = vmatpush.msra.mxu0 0.0
    %542 = vmatpush.msra.mxu0 0.0
    %543 = vmatpush.msra.mxu0 0.0
    %544 = vmatpush.msra.mxu0 0.0
    %545 = vmatpush.msra.mxu0 0.0
    %546 = vmatpush.msra.mxu0 0.0
    %547 = vmatpush.msra.mxu0 %v512
    %548 = vmatpush.msra.mxu0 %v511
    %549 = vmatpush.msra.mxu0 %v510
    %550 = vmatpush.msra.mxu0 %v509
    %551 = vmatpush.msra.mxu0 %v508
    %552 = vmatpush.msra.mxu0 %v507
    %553 = vmatpush.msra.mxu0 %v506
    %554 = vmatpush.msra.mxu0 %v505
    %555 = vmatmul.f32.gmra.mxu0 %v516
    %v556 = vpop.f32.mrf.mxu0
    %v557 = vadd.f32 %v514, %v556
    %558 = vmatmul.f32.gmra.mxu0 %v519
    %v559 = vpop.f32.mrf.mxu0
    %v560 = vadd.f32 %v514, %v559
    %561 = vmatmul.f32.gmra.mxu0 %v522
    %v562 = vpop.f32.mrf.mxu0
    %v563 = vadd.f32 %v514, %v562
    %564 = vmatmul.f32.gmra.mxu0 %v525
    %v565 = vpop.f32.mrf.mxu0
    %v566 = vadd.f32 %v514, %v565
    %567 = vmatmul.f32.gmra.mxu0 %v528
    %v568 = vpop.f32.mrf.mxu0
    %v569 = vadd.f32 %v514, %v568
    %570 = vmatmul.f32.gmra.mxu0 %v531
    %v571 = vpop.f32.mrf.mxu0
    %v572 = vadd.f32 %v514, %v571
    %573 = vmatmul.f32.gmra.mxu0 %v534
    %v574 = vpop.f32.mrf.mxu0
    %v575 = vadd.f32 %v514, %v574
    %576 = vmatmul.f32.gmra.mxu0 %v537
    %v577 = vpop.f32.mrf.mxu0
    %v578 = vadd.f32 %v514, %v577
    %579 = vdwg.mxu0
    %v580 = vmax.f32 %v557, 0.0
    %v581 = vmax.f32 %v560, 0.0
    %v582 = vmax.f32 %v563, 0.0
    %v583 = vmax.f32 %v566, 0.0
    %v584 = vmax.f32 %v569, 0.0
    %v585 = vmax.f32 %v572, 0.0
    %v586 = vmax.f32 %v575, 0.0
    %v587 = vmax.f32 %v578, 0.0
    %v588 = vld [vmem:[%s4] sm:$0xff]
    %v589 = vld [vmem:[%s4 + $0x8] sm:$0xff]
    %v590 = vld [vmem:[%s4 + $0x10] sm:$0xff]
    %v591 = vld [vmem:[%s4 + $0x18] sm:$0xff]
    %v592 = vld [vmem:[%s4 + $0x20] sm:$0xff]
    %v593 = vld [vmem:[%s4 + $0x28] sm:$0xff]
    %v594 = vld [vmem:[%s4 + $0x30] sm:$0xff]
    %v595 = vld [vmem:[%s4 + $0x38] sm:$0xff]
    %v596 = vld [vmem:[%s1 + $0x5] sm:$0x1]
    %v597 = vperm.slane %v596, 0
    %v599 = vsel %vm163, %v580, 0
    %v602 = vsel %vm163, %v581, 0
    %v605 = vsel %vm163, %v582, 0
    %v608 = vsel %vm163, %v583, 0
    %v611 = vsel %vm163, %v584, 0
    %v614 = vsel %vm163, %v585, 0
    %v617 = vsel %vm163, %v586, 0
    %v620 = vsel %vm163, %v587, 0
    %622 = vmatpush.msra.mxu0 0.0
    %623 = vmatpush.msra.mxu0 0.0
    %624 = vmatpush.msra.mxu0 0.0
    %625 = vmatpush.msra.mxu0 0.0
    %626 = vmatpush.msra.mxu0 0.0
    %627 = vmatpush.msra.mxu0 0.0
    %628 = vmatpush.msra.mxu0 0.0
    %629 = vmatpush.msra.mxu0 0.0
    %630 = vmatpush.msra.mxu0 %v595
    %631 = vmatpush.msra.mxu0 %v594
    %632 = vmatpush.msra.mxu0 %v593
    %633 = vmatpush.msra.mxu0 %v592
    %634 = vmatpush.msra.mxu0 %v591
    %635 = vmatpush.msra.mxu0 %v590
    %636 = vmatpush.msra.mxu0 %v589
    %637 = vmatpush.msra.mxu0 %v588
    %638 = vmatmul.f32.gmra.mxu0 %v599
    %v639 = vpop.f32.mrf.mxu0
    %v640 = vadd.f32 %v597, %v639
    %641 = vmatmul.f32.gmra.mxu0 %v602
    %v642 = vpop.f32.mrf.mxu0
    %v643 = vadd.f32 %v597, %v642
    %644 = vmatmul.f32.gmra.mxu0 %v605
    %v645 = vpop.f32.mrf.mxu0
    %v646 = vadd.f32 %v597, %v645
    %647 = vmatmul.f32.gmra.mxu0 %v608
    %v648 = vpop.f32.mrf.mxu0
    %v649 = vadd.f32 %v597, %v648
    %650 = vmatmul.f32.gmra.mxu0 %v611
    %v651 = vpop.f32.mrf.mxu0
    %v652 = vadd.f32 %v597, %v651
    %653 = vmatmul.f32.gmra.mxu0 %v614
    %v654 = vpop.f32.mrf.mxu0
    %v655 = vadd.f32 %v597, %v654
    %656 = vmatmul.f32.gmra.mxu0 %v617
    %v657 = vpop.f32.mrf.mxu0
    %v658 = vadd.f32 %v597, %v657
    %659 = vmatmul.f32.gmra.mxu0 %v620
    %v660 = vpop.f32.mrf.mxu0
    %v661 = vadd.f32 %v597, %v660
    %662 = vdwg.mxu0
    %v663 = vmax.f32 %v640, 0.0
    %v664 = vmax.f32 %v643, 0.0
    %v665 = vmax.f32 %v646, 0.0
    %v666 = vmax.f32 %v649, 0.0
    %v667 = vmax.f32 %v652, 0.0
    %v668 = vmax.f32 %v655, 0.0
    %v669 = vmax.f32 %v658, 0.0
    %v670 = vmax.f32 %v661, 0.0
    %v671 = vld [vmem:[#allocation4] sm:$0xff]
    %v672 = vld [vmem:[#allocation4 + $0x8] sm:$0xff]
    %v673 = vld [vmem:[#allocation4 + $0x10] sm:$0xff]
    %v674 = vld [vmem:[#allocation4 + $0x18] sm:$0xff]
    %v675 = vld [vmem:[#allocation4 + $0x20] sm:$0xff]
    %v676 = vld [vmem:[#allocation4 + $0x28] sm:$0xff]
    %v677 = vld [vmem:[#allocation4 + $0x30] sm:$0xff]
    %v678 = vld [vmem:[#allocation4 + $0x38] sm:$0xff]
    %v679 = vld [vmem:[%s1 + $0x6] sm:$0x1]
    %v680 = vperm.slane %v679, 0
    %v682 = vsel %vm163, %v663, 0
    %v685 = vsel %vm163, %v664, 0
    %v688 = vsel %vm163, %v665, 0
    %v691 = vsel %vm163, %v666, 0
    %v694 = vsel %vm163, %v667, 0
    %v697 = vsel %vm163, %v668, 0
    %v700 = vsel %vm163, %v669, 0
    %v703 = vsel %vm163, %v670, 0
    %705 = vmatpush.msra.mxu0 0.0
    %706 = vmatpush.msra.mxu0 0.0
    %707 = vmatpush.msra.mxu0 0.0
    %708 = vmatpush.msra.mxu0 0.0
    %709 = vmatpush.msra.mxu0 0.0
    %710 = vmatpush.msra.mxu0 0.0
    %711 = vmatpush.msra.mxu0 0.0
    %712 = vmatpush.msra.mxu0 0.0
    %713 = vmatpush.msra.mxu0 %v678
    %714 = vmatpush.msra.mxu0 %v677
    %715 = vmatpush.msra.mxu0 %v676
    %716 = vmatpush.msra.mxu0 %v675
    %717 = vmatpush.msra.mxu0 %v674
    %718 = vmatpush.msra.mxu0 %v673
    %719 = vmatpush.msra.mxu0 %v672
    %720 = vmatpush.msra.mxu0 %v671
    %721 = vmatmul.f32.gmra.mxu0 %v682
    %v722 = vpop.f32.mrf.mxu0
    %v723 = vadd.f32 %v680, %v722
    %724 = vmatmul.f32.gmra.mxu0 %v685
    %v725 = vpop.f32.mrf.mxu0
    %v726 = vadd.f32 %v680, %v725
    %727 = vmatmul.f32.gmra.mxu0 %v688
    %v728 = vpop.f32.mrf.mxu0
    %v729 = vadd.f32 %v680, %v728
    %730 = vmatmul.f32.gmra.mxu0 %v691
    %v731 = vpop.f32.mrf.mxu0
    %v732 = vadd.f32 %v680, %v731
    %733 = vmatmul.f32.gmra.mxu0 %v694
    %v734 = vpop.f32.mrf.mxu0
    %v735 = vadd.f32 %v680, %v734
    %736 = vmatmul.f32.gmra.mxu0 %v697
    %v737 = vpop.f32.mrf.mxu0
    %v738 = vadd.f32 %v680, %v737
    %739 = vmatmul.f32.gmra.mxu0 %v700
    %v740 = vpop.f32.mrf.mxu0
    %v741 = vadd.f32 %v680, %v740
    %742 = vmatmul.f32.gmra.mxu0 %v703
    %v743 = vpop.f32.mrf.mxu0
    %v744 = vadd.f32 %v680, %v743
    %745 = vdwg.mxu0
    %v746 = vmax.f32 %v723, 0.0
    %v747 = vmax.f32 %v726, 0.0
    %v748 = vmax.f32 %v729, 0.0
    %v749 = vmax.f32 %v732, 0.0
    %v750 = vmax.f32 %v735, 0.0
    %v751 = vmax.f32 %v738, 0.0
    %v752 = vmax.f32 %v741, 0.0
    %v753 = vmax.f32 %v744, 0.0
    %v754 = vld [vmem:[#allocation6] sm:$0xff]
    %v755 = vld [vmem:[#allocation6 + $0x8] sm:$0xff]
    %v756 = vld [vmem:[#allocation6 + $0x10] sm:$0xff]
    %v757 = vld [vmem:[#allocation6 + $0x18] sm:$0xff]
    %v758 = vld [vmem:[#allocation6 + $0x20] sm:$0xff]
    %v759 = vld [vmem:[#allocation6 + $0x28] sm:$0xff]
    %v760 = vld [vmem:[#allocation6 + $0x30] sm:$0xff]
    %v761 = vld [vmem:[#allocation6 + $0x38] sm:$0xff]
    %v762 = vld [vmem:[%s1 + $0x7] sm:$0x1]
    %v763 = vperm.slane %v762, 0
    %v765 = vsel %vm163, %v746, 0
    %v768 = vsel %vm163, %v747, 0
    %v771 = vsel %vm163, %v748, 0
    %v774 = vsel %vm163, %v749, 0
    %v777 = vsel %vm163, %v750, 0
    %v780 = vsel %vm163, %v751, 0
    %v783 = vsel %vm163, %v752, 0
    %v786 = vsel %vm163, %v753, 0
    %788 = vmatpush.msra.mxu0 0.0
    %789 = vmatpush.msra.mxu0 0.0
    %790 = vmatpush.msra.mxu0 0.0
    %791 = vmatpush.msra.mxu0 0.0
    %792 = vmatpush.msra.mxu0 0.0
    %793 = vmatpush.msra.mxu0 0.0
    %794 = vmatpush.msra.mxu0 0.0
    %795 = vmatpush.msra.mxu0 0.0
    %796 = vmatpush.msra.mxu0 %v761
    %797 = vmatpush.msra.mxu0 %v760
    %798 = vmatpush.msra.mxu0 %v759
    %799 = vmatpush.msra.mxu0 %v758
    %800 = vmatpush.msra.mxu0 %v757
    %801 = vmatpush.msra.mxu0 %v756
    %802 = vmatpush.msra.mxu0 %v755
    %803 = vmatpush.msra.mxu0 %v754
    %804 = vmatmul.f32.gmra.mxu0 %v765
    %v805 = vpop.f32.mrf.mxu0
    %v806 = vadd.f32 %v763, %v805
    %807 = vmatmul.f32.gmra.mxu0 %v768
    %v808 = vpop.f32.mrf.mxu0
    %v809 = vadd.f32 %v763, %v808
    %810 = vmatmul.f32.gmra.mxu0 %v771
    %v811 = vpop.f32.mrf.mxu0
    %v812 = vadd.f32 %v763, %v811
    %813 = vmatmul.f32.gmra.mxu0 %v774
    %v814 = vpop.f32.mrf.mxu0
    %v815 = vadd.f32 %v763, %v814
    %816 = vmatmul.f32.gmra.mxu0 %v777
    %v817 = vpop.f32.mrf.mxu0
    %v818 = vadd.f32 %v763, %v817
    %819 = vmatmul.f32.gmra.mxu0 %v780
    %v820 = vpop.f32.mrf.mxu0
    %v821 = vadd.f32 %v763, %v820
    %822 = vmatmul.f32.gmra.mxu0 %v783
    %v823 = vpop.f32.mrf.mxu0
    %v824 = vadd.f32 %v763, %v823
    %825 = vmatmul.f32.gmra.mxu0 %v786
    %v826 = vpop.f32.mrf.mxu0
    %v827 = vadd.f32 %v763, %v826
    %828 = vdwg.mxu0
    %v829 = vtanh.pop %v806
    %v830 = vtanh.pop %v809
    %v831 = vtanh.pop %v812
    %v832 = vtanh.pop %v815
    %v833 = vtanh.pop %v818
    %v834 = vtanh.pop %v821
    %v835 = vtanh.pop %v824
    %v836 = vtanh.pop %v827
    %837 = vst [vmem:[%s7] sm:$0xff] %v829
    %838 = vst [vmem:[%s7 + $0x8] sm:$0xff] %v830
    %839 = vst [vmem:[%s7 + $0x10] sm:$0xff] %v831
    %840 = vst [vmem:[%s7 + $0x18] sm:$0xff] %v832
    %841 = vst [vmem:[%s7 + $0x20] sm:$0xff] %v833
    %842 = vst [vmem:[%s7 + $0x28] sm:$0xff] %v834
    %843 = vst [vmem:[%s7 + $0x30] sm:$0xff] %v835
    %844 = vst [vmem:[%s7 + $0x38] sm:$0xff] %v836
    // Predicated region
    $region42: #{actor_model_forward.1} parent=1 // pred_check
      _
    $region43: #{actor_model_forward.1} parent=1 // pred_check_branch
      %846 = sbr.rel (0) target = $region45
    $region44: #{actor_model_forward.1} parent=1 // pred_region
      _
    $region45: #{actor_model_forward.1} parent=1 // pred_fallthru
      _
    // Predicated region
    $region46: #{actor_model_forward.1} parent=1 // pred_check
      _
    $region47: #{actor_model_forward.1} parent=1 // pred_check_branch
      %848 = sbr.rel (0) target = $region49
    $region48: #{actor_model_forward.1} parent=1 // pred_region
      _
    $region49: #{actor_model_forward.1} parent=1 // pred_fallthru
      _
    %849 = vsyncpa [#allocation3], 1
    %850 = vsyncpa [#allocation5], 1

</llo_original>
